<compile_context>
chip_gen: v6e
topology: v6e:2x2x1
jax: 0.10.0
libtpu: 0.0.40
codegen_flags: <defaults>
</compile_context>

<pallas_src>
import functools

import jax
import jax.numpy as jnp
from jax.experimental import pallas as pl
from jax.experimental.pallas import tpu as pltpu

EPS = 1e-5
LRELU_SLOPE = 0.01
# Safe on every generation (v5e/v6e: 128 MiB physical VMEM, v7x: 64 MiB).
_VMEM_LIMIT_BYTES = 48 * 1024 * 1024


def _spatial_tile(s):
    """Lane-dense spatial tiling: tile is a multiple of 128, capped at 1024."""
    s128 = int(pl.cdiv(s, 128)) * 128
    ts = min(s128, 1024)
    s_pad = int(pl.cdiv(s, ts)) * ts
    return ts, s_pad


# ---------------------------------------------------------------------------
# Conv3d (k=3, arbitrary stride/padding) as a Pallas matmul over im2col.
# ---------------------------------------------------------------------------
def _im2col_3d(x, ksize, stride, padding):
    """(N, C, D, H, W) -> patches (N, C*k^3, Do*Ho*Wo). Pure layout plumbing."""
    n, c, d, h, w = x.shape
    do = (d + 2 * padding - ksize) // stride + 1
    ho = (h + 2 * padding - ksize) // stride + 1
    wo = (w + 2 * padding - ksize) // stride + 1
    xp = jnp.pad(x, ((0, 0), (0, 0), (padding, padding),
                     (padding, padding), (padding, padding)))
    taps = []
    for kd in range(ksize):
        for kh in range(ksize):
            for kw in range(ksize):
                taps.append(xp[:, :,
                               kd:kd + stride * do:stride,
                               kh:kh + stride * ho:stride,
                               kw:kw + stride * wo:stride])
    patches = jnp.stack(taps, axis=2)                      # (N, C, 27, Do, Ho, Wo)
    patches = patches.reshape(n, c * ksize ** 3, do * ho * wo)
    return patches, (do, ho, wo)


def _conv_mm_kernel(p_ref, w_ref, b_ref, o_ref):
    # p_ref: (1, K, TS)  w_ref: (Cout, K)  b_ref: (Cout, 1)  o_ref: (1, Cout, TS)
    acc = jnp.dot(w_ref[...].astype(jnp.float32),
                  p_ref[0].astype(jnp.float32),
                  preferred_element_type=jnp.float32)       # MXU, >=128 lanes
    o_ref[0] = (acc + b_ref[...].astype(jnp.float32)).astype(o_ref.dtype)


def conv3d_pallas(x, w, b, *, stride, padding):
    """Returns (y, S_true, (Do,Ho,Wo), TS); y has shape (N, Cout, S_pad)."""
    n = x.shape[0]
    c_out, ksize = w.shape[0], w.shape[2]
    patches, (do, ho, wo) = _im2col_3d(x, ksize, stride, padding)
    k = patches.shape[1]
    s = do * ho * wo
    ts, s_pad = _spatial_tile(s)

    # Pad K to a sublane multiple and S to a multiple of the lane tile.
    k_pad = int(pl.cdiv(k, 8)) * 8
    patches = jnp.pad(patches, ((0, 0), (0, k_pad - k), (0, s_pad - s)))
    w2d = jnp.pad(w.reshape(c_out, k), ((0, 0), (0, k_pad - k)))
    b2d = b.reshape(c_out, 1)

    y = pl.pallas_call(
        _conv_mm_kernel,
        out_shape=jax.ShapeDtypeStruct((n, c_out, s_pad), x.dtype),
        grid=(n, s_pad // ts),
        in_specs=[
            pl.BlockSpec((1, k_pad, ts), lambda i, j: (i, 0, j)),
            pl.BlockSpec((c_out, k_pad), lambda i, j: (0, 0)),
            pl.BlockSpec((c_out, 1), lambda i, j: (0, 0)),
        ],
        out_specs=pl.BlockSpec((1, c_out, ts), lambda i, j: (i, 0, j)),
        compiler_params=pltpu.CompilerParams(
            dimension_semantics=("parallel", "parallel"),
            vmem_limit_bytes=_VMEM_LIMIT_BYTES),
    )(patches, w2d, b2d)
    return y, s, (do, ho, wo), ts


# ---------------------------------------------------------------------------
# Fused InstanceNorm3d(affine) + LeakyReLU, two-phase over spatial tiles.
# ---------------------------------------------------------------------------
def _instnorm_lrelu_kernel(x_ref, gamma_ref, beta_ref, o_ref,
                           sum_acc, sq_acc, scale, shift, *, s_true, ts):
    phase = pl.program_id(1)
    si = pl.program_id(2)

    x = x_ref[0].astype(jnp.float32)                        # (C, TS)

    @pl.when((phase == 0) & (si == 0))
    def _():
        sum_acc[...] = jnp.zeros_like(sum_acc)
        sq_acc[...] = jnp.zeros_like(sq_acc)

    @pl.when(phase == 0)
    def _():
        # Mask the zero-padded spatial tail out of the statistics.
        lane = jax.lax.broadcasted_iota(jnp.int32, x.shape, 1) + si * ts
        xm = jnp.where(lane < s_true, x, 0.0)
        sum_acc[...] = sum_acc[...] + xm                    # VPU adds only
        sq_acc[...] = sq_acc[...] + xm * xm

    @pl.when((phase == 1) & (si == 0))
    def _():
        inv_n = 1.0 / float(s_true)
        mean = jnp.sum(sum_acc[...], axis=-1, keepdims=True) * inv_n   # one XLU reduce
        ex2 = jnp.sum(sq_acc[...], axis=-1, keepdims=True) * inv_n
        var = jnp.maximum(ex2 - mean * mean, 0.0)
        sc = gamma_ref[...].astype(jnp.float32) * jax.lax.rsqrt(var + EPS)
        scale[...] = sc
        shift[...] = beta_ref[...].astype(jnp.float32) - mean * sc

    @pl.when(phase == 1)
    def _():
        y = x * scale[...] + shift[...]
        y = jnp.where(y >= 0.0, y, LRELU_SLOPE * y)
        o_ref[0] = y.astype(o_ref.dtype)


def instnorm_lrelu_pallas(x3, gamma, beta, *, s_true, ts):
    n, c, s_pad = x3.shape
    kernel = functools.partial(_instnorm_lrelu_kernel, s_true=s_true, ts=ts)
    return pl.pallas_call(
        kernel,
        out_shape=jax.ShapeDtypeStruct((n, c, s_pad), x3.dtype),
        grid=(n, 2, s_pad // ts),
        in_specs=[
            pl.BlockSpec((1, c, ts), lambda i, p, j: (i, 0, j)),
            pl.BlockSpec((c, 1), lambda i, p, j: (0, 0)),
            pl.BlockSpec((c, 1), lambda i, p, j: (0, 0)),
        ],
        # Revisit block (i, 0) during the pooling phase (no garbage writeback);
        # phase 1 walks the real spatial tiles (lane-dense, multiple of 128).
        out_specs=pl.BlockSpec((1, c, ts), lambda i, p, j: (i, 0, j * p)),
        scratch_shapes=[
            pltpu.VMEM((c, ts), jnp.float32),   # lane-wide partial sums
            pltpu.VMEM((c, ts), jnp.float32),   # lane-wide partial sums of squares
            pltpu.VMEM((c, 1), jnp.float32),    # per-channel scale = gamma/std
            pltpu.VMEM((c, 1), jnp.float32),    # per-channel shift = beta - mean*scale
        ],
        compiler_params=pltpu.CompilerParams(
            dimension_semantics=("parallel", "arbitrary", "arbitrary"),
            vmem_limit_bytes=_VMEM_LIMIT_BYTES),
    )(x3, gamma.reshape(c, 1), beta.reshape(c, 1))


# ---------------------------------------------------------------------------
# Module forward
# ---------------------------------------------------------------------------
def conv_in_lrelu_block(x, w, b, gamma, beta, *, stride, padding):
    y, s_true, (do, ho, wo), ts = conv3d_pallas(x, w, b, stride=stride, padding=padding)
    z = instnorm_lrelu_pallas(y, gamma, beta, s_true=s_true, ts=ts)
    n, c_out = z.shape[0], z.shape[1]
    return z[:, :, :s_true].reshape(n, c_out, do, ho, wo)


def stacked_conv_layers(x, params):
    """StackedConvLayers default path (is_up=False, is_first=False):
       Conv(k3,s2,p1)+IN+LReLU  ->  Conv(k3,s1,p1)+IN+LReLU."""
    (w1, b1, g1, be1), (w2, b2, g2, be2) = params
    x = conv_in_lrelu_block(x, w1, b1, g1, be1, stride=2, padding=1)
    x = conv_in_lrelu_block(x, w2, b2, g2, be2, stride=1, padding=1)
    return x


# ---------------------------------------------------------------------------
# Pure-JAX reference mirroring the PyTorch forward
# ---------------------------------------------------------------------------
def _block_ref(x, w, b, gamma, beta, stride, padding):
    y = jax.lax.conv_general_dilated(
        x, w, window_strides=(stride,) * 3,
        padding=[(padding, padding)] * 3,
        dimension_numbers=("NCDHW", "OIDHW", "NCDHW"),
        precision=jax.lax.Precision.HIGHEST)
    y = y + b.reshape(1, -1, 1, 1, 1)
    mean = y.mean(axis=(2, 3, 4), keepdims=True)
    var = y.var(axis=(2, 3, 4), keepdims=True)
    y = (y - mean) * jax.lax.rsqrt(var + EPS)
    y = y * gamma.reshape(1, -1, 1, 1, 1) + beta.reshape(1, -1, 1, 1, 1)
    return jnp.where(y >= 0.0, y, LRELU_SLOPE * y)


def stacked_conv_layers_ref(x, params):
    (w1, b1, g1, be1), (w2, b2, g2, be2) = params
    y = _block_ref(x, w1, b1, g1, be1, 2, 1)
    return _block_ref(y, w2, b2, g2, be2, 1, 1)


if __name__ == "__main__":
    N, C_in, C_out = 2, 4, 8
    D = H = W = 8

    key = jax.random.PRNGKey(0)
    ks = jax.random.split(key, 9)

    x = jax.random.normal(ks[0], (N, C_in, D, H, W), dtype=jnp.float32)

    w1 = 0.1 * jax.random.normal(ks[1], (C_out, C_in, 3, 3, 3), dtype=jnp.float32)
    b1 = 0.1 * jax.random.normal(ks[2], (C_out,), dtype=jnp.float32)
    g1 = 1.0 + 0.1 * jax.random.normal(ks[3], (C_out,), dtype=jnp.float32)
    be1 = 0.1 * jax.random.normal(ks[4], (C_out,), dtype=jnp.float32)

    w2 = 0.1 * jax.random.normal(ks[5], (C_out, C_out, 3, 3, 3), dtype=jnp.float32)
    b2 = 0.1 * jax.random.normal(ks[6], (C_out,), dtype=jnp.float32)
    g2 = 1.0 + 0.1 * jax.random.normal(ks[7], (C_out,), dtype=jnp.float32)
    be2 = 0.1 * jax.random.normal(ks[8], (C_out,), dtype=jnp.float32)

    params = ((w1, b1, g1, be1), (w2, b2, g2, be2))

    out = jax.jit(stacked_conv_layers)(x, params)
    out = jax.block_until_ready(out)

    ref = stacked_conv_layers_ref(x, params)
    assert out.shape == (N, C_out, D // 2, H // 2, W // 2), out.shape
    max_err = float(jnp.max(jnp.abs(out - ref)))
    assert jnp.allclose(out, ref, atol=2e-2, rtol=2e-2), max_err

    print("KERNEL_OK")
</pallas_src>

<mosaic_0001>
module attributes {stable_mosaic.version = 11 : i64} {
  func.func @_conv_mm_kernel(%arg0: i32, %arg1: i32, %arg2: memref<1x112x128xf32, #tpu.memory_space<vmem>>, %arg3: memref<8x112xf32, #tpu.memory_space<vmem>>, %arg4: memref<8x1xf32, #tpu.memory_space<vmem>>, %arg5: memref<1x8x128xf32, #tpu.memory_space<vmem>>) attributes {dimension_semantics = [#tpu.dimension_semantics<parallel>, #tpu.dimension_semantics<parallel>], iteration_bounds = array<i64: 2, 1>, scalar_prefetch = 0 : i64, scratch_operands = 0 : i64, tpu.core_type = #tpu.core_type<tc>, window_params = [{transform_indices = @transform_0, window_bounds = array<i64: 1, 112, 128>}, {pipeline_mode = #tpu.pipeline_mode<synchronous>, transform_indices = @transform_1, window_bounds = array<i64: 8, 112>}, {pipeline_mode = #tpu.pipeline_mode<synchronous>, transform_indices = @transform_2, window_bounds = array<i64: 8, 1>}, {transform_indices = @transform_3, window_bounds = array<i64: 1, 8, 128>}]} {
    %c0 = arith.constant 0 : index
    %c0_0 = arith.constant 0 : index
    %0 = vector.load %arg3[%c0, %c0_0] : memref<8x112xf32, #tpu.memory_space<vmem>>, vector<8x112xf32>
    %c0_1 = arith.constant 0 : index
    %c0_2 = arith.constant 0 : index
    %c0_3 = arith.constant 0 : index
    %1 = vector.load %arg2[%c0_1, %c0_2, %c0_3] : memref<1x112x128xf32, #tpu.memory_space<vmem>>, vector<1x112x128xf32>
    %2 = vector.shape_cast %1 : vector<1x112x128xf32> to vector<112x128xf32>
    %cst = arith.constant dense<0.000000e+00> : vector<8x128xf32>
    %3 = tpu.matmul %0, %2, %cst {dimension_numbers = #tpu.dot_dimension_numbers<[1], [0], [0], [1], [0, 0, 1, 1], [], []>} : vector<8x112xf32>, vector<112x128xf32>, vector<8x128xf32> -> vector<8x128xf32>
    %c0_4 = arith.constant 0 : index
    %c0_5 = arith.constant 0 : index
    %4 = vector.load %arg4[%c0_4, %c0_5] : memref<8x1xf32, #tpu.memory_space<vmem>>, vector<8x1xf32>
    %5 = vector.broadcast %4 : vector<8x1xf32> to vector<8x128xf32>
    %6 = arith.addf %3, %5 : vector<8x128xf32>
    %c0_6 = arith.constant 0 : index
    %c0_7 = arith.constant 0 : index
    %c0_8 = arith.constant 0 : index
    %7 = vector.load %arg5[%c0_6, %c0_7, %c0_8] : memref<1x8x128xf32, #tpu.memory_space<vmem>>, vector<1x8x128xf32>
    %8 = vector.shape_cast %7 : vector<1x8x128xf32> to vector<8x128xf32>
    %9 = vector.shape_cast %6 : vector<8x128xf32> to vector<1x8x128xf32>
    tpu.vector_store %arg5[%c0_6, %c0_7, %c0_8], %9 {strides = array<i32>} : memref<1x8x128xf32, #tpu.memory_space<vmem>>, vector<1x8x128xf32>,
    return
  }
  func.func @transform_0(%arg0: i32, %arg1: i32) -> (i32, i32, i32) {
    %c0_i32 = arith.constant 0 : i32
    %c0_i32_0 = arith.constant 0 : i32
    return %arg0, %c0_i32, %arg1 : i32, i32, i32
  }
  func.func @transform_1(%arg0: i32, %arg1: i32) -> (i32, i32) {
    %c0_i32 = arith.constant 0 : i32
    %c0_i32_0 = arith.constant 0 : i32
    %c0_i32_1 = arith.constant 0 : i32
    return %c0_i32, %c0_i32_0 : i32, i32
  }
  func.func @transform_2(%arg0: i32, %arg1: i32) -> (i32, i32) {
    %c0_i32 = arith.constant 0 : i32
    %c0_i32_0 = arith.constant 0 : i32
    %c0_i32_1 = arith.constant 0 : i32
    return %c0_i32, %c0_i32_0 : i32, i32
  }
  func.func @transform_3(%arg0: i32, %arg1: i32) -> (i32, i32, i32) {
    %c0_i32 = arith.constant 0 : i32
    %c0_i32_0 = arith.constant 0 : i32
    return %arg0, %c0_i32, %arg1 : i32, i32, i32
  }
}

module attributes {stable_mosaic.version = 11 : i64} {
  func.func @_instnorm_lrelu_kernel(%arg0: i32, %arg1: i32, %arg2: i32, %arg3: memref<1x8x128xf32, #tpu.memory_space<vmem>>, %arg4: memref<8x1xf32, #tpu.memory_space<vmem>>, %arg5: memref<8x1xf32, #tpu.memory_space<vmem>>, %arg6: memref<1x8x128xf32, #tpu.memory_space<vmem>>, %arg7: memref<8x128xf32, #tpu.memory_space<vmem>>, %arg8: memref<8x128xf32, #tpu.memory_space<vmem>>, %arg9: memref<8x1xf32, #tpu.memory_space<vmem>>, %arg10: memref<8x1xf32, #tpu.memory_space<vmem>>) attributes {dimension_semantics = [#tpu.dimension_semantics<parallel>, #tpu.dimension_semantics<arbitrary>, #tpu.dimension_semantics<arbitrary>], iteration_bounds = array<i64: 2, 2, 1>, scalar_prefetch = 0 : i64, scratch_operands = 4 : i64, tpu.core_type = #tpu.core_type<tc>, window_params = [{transform_indices = @transform_0, window_bounds = array<i64: 1, 8, 128>}, {pipeline_mode = #tpu.pipeline_mode<synchronous>, transform_indices = @transform_1, window_bounds = array<i64: 8, 1>}, {pipeline_mode = #tpu.pipeline_mode<synchronous>, transform_indices = @transform_2, window_bounds = array<i64: 8, 1>}, {transform_indices = @transform_3, window_bounds = array<i64: 1, 8, 128>}]} {
    %c0 = arith.constant 0 : index
    %c0_0 = arith.constant 0 : index
    %c0_1 = arith.constant 0 : index
    %0 = vector.load %arg3[%c0, %c0_0, %c0_1] : memref<1x8x128xf32, #tpu.memory_space<vmem>>, vector<1x8x128xf32>
    %1 = vector.shape_cast %0 : vector<1x8x128xf32> to vector<8x128xf32>
    %c0_i32 = arith.constant 0 : i32
    %2 = arith.cmpi eq, %arg1, %c0_i32 : i32
    %c0_i32_2 = arith.constant 0 : i32
    %3 = arith.cmpi eq, %arg2, %c0_i32_2 : i32
    %4 = arith.andi %2, %3 : i1
    %5 = arith.extui %4 : i1 to i32
    %c0_i32_3 = arith.constant 0 : i32
    %6 = arith.cmpi ne, %5, %c0_i32_3 : i32
    scf.if %6 {
      %cst = arith.constant 0.000000e+00 : f32
      %18 = vector.broadcast %cst : f32 to vector<8x128xf32>
      %c0_10 = arith.constant 0 : index
      %c0_11 = arith.constant 0 : index
      %19 = vector.load %arg7[%c0_10, %c0_11] : memref<8x128xf32, #tpu.memory_space<vmem>>, vector<8x128xf32>
      tpu.vector_store %arg7[%c0_10, %c0_11], %18 {strides = array<i32>} : memref<8x128xf32, #tpu.memory_space<vmem>>, vector<8x128xf32>,
      %cst_12 = arith.constant 0.000000e+00 : f32
      %20 = vector.broadcast %cst_12 : f32 to vector<8x128xf32>
      %c0_13 = arith.constant 0 : index
      %c0_14 = arith.constant 0 : index
      %21 = vector.load %arg8[%c0_13, %c0_14] : memref<8x128xf32, #tpu.memory_space<vmem>>, vector<8x128xf32>
      tpu.vector_store %arg8[%c0_13, %c0_14], %20 {strides = array<i32>} : memref<8x128xf32, #tpu.memory_space<vmem>>, vector<8x128xf32>,
    } else {
    }
    %c0_i32_4 = arith.constant 0 : i32
    %7 = arith.cmpi eq, %arg1, %c0_i32_4 : i32
    %8 = arith.extui %7 : i1 to i32
    %c0_i32_5 = arith.constant 0 : i32
    %9 = arith.cmpi ne, %8, %c0_i32_5 : i32
    scf.if %9 {
      %18 = tpu.iota {dimensions = array<i32: 1>} : vector<8x128xi32>
      %c128_i32 = arith.constant 128 : i32
      %19 = arith.muli %arg2, %c128_i32 : i32
      %20 = vector.broadcast %19 : i32 to vector<8x128xi32>
      %21 = arith.addi %18, %20 : vector<8x128xi32>
      %c64_i32 = arith.constant 64 : i32
      %22 = vector.broadcast %c64_i32 : i32 to vector<8x128xi32>
      %23 = arith.cmpi slt, %21, %22 : vector<8x128xi32>
      %cst = arith.constant 0.000000e+00 : f32
      %24 = vector.broadcast %cst : f32 to vector<8x128xf32>
      %25 = arith.select %23, %1, %24 : vector<8x128xi1>, vector<8x128xf32>
      %c0_10 = arith.constant 0 : index
      %c0_11 = arith.constant 0 : index
      %26 = vector.load %arg7[%c0_10, %c0_11] : memref<8x128xf32, #tpu.memory_space<vmem>>, vector<8x128xf32>
      %27 = arith.addf %26, %25 : vector<8x128xf32>
      %c0_12 = arith.constant 0 : index
      %c0_13 = arith.constant 0 : index
      %28 = vector.load %arg7[%c0_12, %c0_13] : memref<8x128xf32, #tpu.memory_space<vmem>>, vector<8x128xf32>
      tpu.vector_store %arg7[%c0_12, %c0_13], %27 {strides = array<i32>} : memref<8x128xf32, #tpu.memory_space<vmem>>, vector<8x128xf32>,
      %c0_14 = arith.constant 0 : index
      %c0_15 = arith.constant 0 : index
      %29 = vector.load %arg8[%c0_14, %c0_15] : memref<8x128xf32, #tpu.memory_space<vmem>>, vector<8x128xf32>
      %30 = arith.mulf %25, %25 : vector<8x128xf32>
      %31 = arith.addf %29, %30 : vector<8x128xf32>
      %c0_16 = arith.constant 0 : index
      %c0_17 = arith.constant 0 : index
      %32 = vector.load %arg8[%c0_16, %c0_17] : memref<8x128xf32, #tpu.memory_space<vmem>>, vector<8x128xf32>
      tpu.vector_store %arg8[%c0_16, %c0_17], %31 {strides = array<i32>} : memref<8x128xf32, #tpu.memory_space<vmem>>, vector<8x128xf32>,
    } else {
    }
    %c1_i32 = arith.constant 1 : i32
    %10 = arith.cmpi eq, %arg1, %c1_i32 : i32
    %c0_i32_6 = arith.constant 0 : i32
    %11 = arith.cmpi eq, %arg2, %c0_i32_6 : i32
    %12 = arith.andi %10, %11 : i1
    %13 = arith.extui %12 : i1 to i32
    %c0_i32_7 = arith.constant 0 : i32
    %14 = arith.cmpi ne, %13, %c0_i32_7 : i32
    scf.if %14 {
      %c0_10 = arith.constant 0 : index
      %c0_11 = arith.constant 0 : index
      %18 = vector.load %arg7[%c0_10, %c0_11] : memref<8x128xf32, #tpu.memory_space<vmem>>, vector<8x128xf32>
      %cst = arith.constant dense<0.000000e+00> : vector<8xf32>
      %19 = vector.multi_reduction <add>, %18, %cst [1] : vector<8x128xf32> to vector<8xf32>
      %20 = vector.shape_cast %19 : vector<8xf32> to vector<8x1xf32>
      %cst_12 = arith.constant 1.562500e-02 : f32
      %21 = vector.broadcast %cst_12 : f32 to vector<8x1xf32>
      %22 = arith.mulf %20, %21 : vector<8x1xf32>
      %c0_13 = arith.constant 0 : index
      %c0_14 = arith.constant 0 : index
      %23 = vector.load %arg8[%c0_13, %c0_14] : memref<8x128xf32, #tpu.memory_space<vmem>>, vector<8x128xf32>
      %cst_15 = arith.constant dense<0.000000e+00> : vector<8xf32>
      %24 = vector.multi_reduction <add>, %23, %cst_15 [1] : vector<8x128xf32> to vector<8xf32>
      %25 = vector.shape_cast %24 : vector<8xf32> to vector<8x1xf32>
      %cst_16 = arith.constant 1.562500e-02 : f32
      %26 = vector.broadcast %cst_16 : f32 to vector<8x1xf32>
      %27 = arith.mulf %25, %26 : vector<8x1xf32>
      %28 = arith.mulf %22, %22 : vector<8x1xf32>
      %29 = arith.subf %27, %28 : vector<8x1xf32>
      %cst_17 = arith.constant 0.000000e+00 : f32
      %30 = vector.broadcast %cst_17 : f32 to vector<8x1xf32>
      %31 = arith.maximumf %29, %30 : vector<8x1xf32>
      %c0_18 = arith.constant 0 : index
      %c0_19 = arith.constant 0 : index
      %32 = vector.load %arg4[%c0_18, %c0_19] : memref<8x1xf32, #tpu.memory_space<vmem>>, vector<8x1xf32>
      %cst_20 = arith.constant 9.99999974E-6 : f32
      %33 = vector.broadcast %cst_20 : f32 to vector<8x1xf32>
      %34 = arith.addf %31, %33 : vector<8x1xf32>
      %35 = math.rsqrt %34 : vector<8x1xf32>
      %36 = arith.mulf %32, %35 : vector<8x1xf32>
      %c0_21 = arith.constant 0 : index
      %c0_22 = arith.constant 0 : index
      %37 = vector.load %arg9[%c0_21, %c0_22] : memref<8x1xf32, #tpu.memory_space<vmem>>, vector<8x1xf32>
      tpu.vector_store %arg9[%c0_21, %c0_22], %36 {strides = array<i32>} : memref<8x1xf32, #tpu.memory_space<vmem>>, vector<8x1xf32>,
      %c0_23 = arith.constant 0 : index
      %c0_24 = arith.constant 0 : index
      %38 = vector.load %arg5[%c0_23, %c0_24] : memref<8x1xf32, #tpu.memory_space<vmem>>, vector<8x1xf32>
      %39 = arith.mulf %22, %36 : vector<8x1xf32>
      %40 = arith.subf %38, %39 : vector<8x1xf32>
      %c0_25 = arith.constant 0 : index
      %c0_26 = arith.constant 0 : index
      %41 = vector.load %arg10[%c0_25, %c0_26] : memref<8x1xf32, #tpu.memory_space<vmem>>, vector<8x1xf32>
      tpu.vector_store %arg10[%c0_25, %c0_26], %40 {strides = array<i32>} : memref<8x1xf32, #tpu.memory_space<vmem>>, vector<8x1xf32>,
    } else {
    }
    %c1_i32_8 = arith.constant 1 : i32
    %15 = arith.cmpi eq, %arg1, %c1_i32_8 : i32
    %16 = arith.extui %15 : i1 to i32
    %c0_i32_9 = arith.constant 0 : i32
    %17 = arith.cmpi ne, %16, %c0_i32_9 : i32
    scf.if %17 {
      %c0_10 = arith.constant 0 : index
      %c0_11 = arith.constant 0 : index
      %18 = vector.load %arg9[%c0_10, %c0_11] : memref<8x1xf32, #tpu.memory_space<vmem>>, vector<8x1xf32>
      %19 = vector.broadcast %18 : vector<8x1xf32> to vector<8x128xf32>
      %20 = arith.mulf %1, %19 : vector<8x128xf32>
      %c0_12 = arith.constant 0 : index
      %c0_13 = arith.constant 0 : index
      %21 = vector.load %arg10[%c0_12, %c0_13] : memref<8x1xf32, #tpu.memory_space<vmem>>, vector<8x1xf32>
      %22 = vector.broadcast %21 : vector<8x1xf32> to vector<8x128xf32>
      %23 = arith.addf %20, %22 : vector<8x128xf32>
      %cst = arith.constant 0.000000e+00 : f32
      %24 = vector.broadcast %cst : f32 to vector<8x128xf32>
      %25 = arith.cmpf oge, %23, %24 : vector<8x128xf32>
      %cst_14 = arith.constant 0.00999999977 : f32
      %26 = vector.broadcast %cst_14 : f32 to vector<8x128xf32>
      %27 = arith.mulf %26, %23 : vector<8x128xf32>
      %28 = arith.select %25, %23, %27 : vector<8x128xi1>, vector<8x128xf32>
      %c0_15 = arith.constant 0 : index
      %c0_16 = arith.constant 0 : index
      %c0_17 = arith.constant 0 : index
      %29 = vector.load %arg6[%c0_15, %c0_16, %c0_17] : memref<1x8x128xf32, #tpu.memory_space<vmem>>, vector<1x8x128xf32>
      %30 = vector.shape_cast %29 : vector<1x8x128xf32> to vector<8x128xf32>
      %31 = vector.shape_cast %28 : vector<8x128xf32> to vector<1x8x128xf32>
      tpu.vector_store %arg6[%c0_15, %c0_16, %c0_17], %31 {strides = array<i32>} : memref<1x8x128xf32, #tpu.memory_space<vmem>>, vector<1x8x128xf32>,
    } else {
    }
    return
  }
  func.func @transform_0(%arg0: i32, %arg1: i32, %arg2: i32) -> (i32, i32, i32) {
    %c0_i32 = arith.constant 0 : i32
    %c0_i32_0 = arith.constant 0 : i32
    return %arg0, %c0_i32, %arg2 : i32, i32, i32
  }
  func.func @transform_1(%arg0: i32, %arg1: i32, %arg2: i32) -> (i32, i32) {
    %c0_i32 = arith.constant 0 : i32
    %c0_i32_0 = arith.constant 0 : i32
    %c0_i32_1 = arith.constant 0 : i32
    return %c0_i32, %c0_i32_0 : i32, i32
  }
  func.func @transform_2(%arg0: i32, %arg1: i32, %arg2: i32) -> (i32, i32) {
    %c0_i32 = arith.constant 0 : i32
    %c0_i32_0 = arith.constant 0 : i32
    %c0_i32_1 = arith.constant 0 : i32
    return %c0_i32, %c0_i32_0 : i32, i32
  }
  func.func @transform_3(%arg0: i32, %arg1: i32, %arg2: i32) -> (i32, i32, i32) {
    %0 = arith.muli %arg2, %arg1 : i32
    %c0_i32 = arith.constant 0 : i32
    %c0_i32_0 = arith.constant 0 : i32
    return %arg0, %c0_i32, %0 : i32, i32, i32
  }
}

module attributes {stable_mosaic.version = 11 : i64} {
  func.func @_conv_mm_kernel(%arg0: i32, %arg1: i32, %arg2: memref<1x216x128xf32, #tpu.memory_space<vmem>>, %arg3: memref<8x216xf32, #tpu.memory_space<vmem>>, %arg4: memref<8x1xf32, #tpu.memory_space<vmem>>, %arg5: memref<1x8x128xf32, #tpu.memory_space<vmem>>) attributes {dimension_semantics = [#tpu.dimension_semantics<parallel>, #tpu.dimension_semantics<parallel>], iteration_bounds = array<i64: 2, 1>, scalar_prefetch = 0 : i64, scratch_operands = 0 : i64, tpu.core_type = #tpu.core_type<tc>, window_params = [{transform_indices = @transform_0, window_bounds = array<i64: 1, 216, 128>}, {pipeline_mode = #tpu.pipeline_mode<synchronous>, transform_indices = @transform_1, window_bounds = array<i64: 8, 216>}, {pipeline_mode = #tpu.pipeline_mode<synchronous>, transform_indices = @transform_2, window_bounds = array<i64: 8, 1>}, {transform_indices = @transform_3, window_bounds = array<i64: 1, 8, 128>}]} {
    %c0 = arith.constant 0 : index
    %c0_0 = arith.constant 0 : index
    %0 = vector.load %arg3[%c0, %c0_0] : memref<8x216xf32, #tpu.memory_space<vmem>>, vector<8x216xf32>
    %c0_1 = arith.constant 0 : index
    %c0_2 = arith.constant 0 : index
    %c0_3 = arith.constant 0 : index
    %1 = vector.load %arg2[%c0_1, %c0_2, %c0_3] : memref<1x216x128xf32, #tpu.memory_space<vmem>>, vector<1x216x128xf32>
    %2 = vector.shape_cast %1 : vector<1x216x128xf32> to vector<216x128xf32>
    %cst = arith.constant dense<0.000000e+00> : vector<8x128xf32>
    %3 = tpu.matmul %0, %2, %cst {dimension_numbers = #tpu.dot_dimension_numbers<[1], [0], [0], [1], [0, 0, 1, 1], [], []>} : vector<8x216xf32>, vector<216x128xf32>, vector<8x128xf32> -> vector<8x128xf32>
    %c0_4 = arith.constant 0 : index
    %c0_5 = arith.constant 0 : index
    %4 = vector.load %arg4[%c0_4, %c0_5] : memref<8x1xf32, #tpu.memory_space<vmem>>, vector<8x1xf32>
    %5 = vector.broadcast %4 : vector<8x1xf32> to vector<8x128xf32>
    %6 = arith.addf %3, %5 : vector<8x128xf32>
    %c0_6 = arith.constant 0 : index
    %c0_7 = arith.constant 0 : index
    %c0_8 = arith.constant 0 : index
    %7 = vector.load %arg5[%c0_6, %c0_7, %c0_8] : memref<1x8x128xf32, #tpu.memory_space<vmem>>, vector<1x8x128xf32>
    %8 = vector.shape_cast %7 : vector<1x8x128xf32> to vector<8x128xf32>
    %9 = vector.shape_cast %6 : vector<8x128xf32> to vector<1x8x128xf32>
    tpu.vector_store %arg5[%c0_6, %c0_7, %c0_8], %9 {strides = array<i32>} : memref<1x8x128xf32, #tpu.memory_space<vmem>>, vector<1x8x128xf32>,
    return
  }
  func.func @transform_0(%arg0: i32, %arg1: i32) -> (i32, i32, i32) {
    %c0_i32 = arith.constant 0 : i32
    %c0_i32_0 = arith.constant 0 : i32
    return %arg0, %c0_i32, %arg1 : i32, i32, i32
  }
  func.func @transform_1(%arg0: i32, %arg1: i32) -> (i32, i32) {
    %c0_i32 = arith.constant 0 : i32
    %c0_i32_0 = arith.constant 0 : i32
    %c0_i32_1 = arith.constant 0 : i32
    return %c0_i32, %c0_i32_0 : i32, i32
  }
  func.func @transform_2(%arg0: i32, %arg1: i32) -> (i32, i32) {
    %c0_i32 = arith.constant 0 : i32
    %c0_i32_0 = arith.constant 0 : i32
    %c0_i32_1 = arith.constant 0 : i32
    return %c0_i32, %c0_i32_0 : i32, i32
  }
  func.func @transform_3(%arg0: i32, %arg1: i32) -> (i32, i32, i32) {
    %c0_i32 = arith.constant 0 : i32
    %c0_i32_0 = arith.constant 0 : i32
    return %arg0, %c0_i32, %arg1 : i32, i32, i32
  }
}

</mosaic_0001>

<llo_original>
// kernel: stacked_conv_layers.4
$region0: #{stacked_conv_layers.4}
  #allocation0 [shape = 'u32[]', space=smem, size = 0x4, offset = 0x4, fixed_abs, tag = 'smem constant byte address 0x4 - core index']
  #allocation1 [shape = 'u32[144,128]{1,0:T(1,128)}', space=vmem, size = 0x12000, scoped, tag = 'internal scratch']
  %s0 = inlined_call_operand.vmem [shape: f32[2,112,128], index: 0, kind: input, shape index: {}]
  %s1 = inlined_call_operand.vmem [shape: f32[8,112], index: 1, kind: input, shape index: {}]
  %s2 = inlined_call_operand.vmem [shape: f32[8,1], index: 2, kind: input, shape index: {}]
  %s3 = inlined_call_operand.vmem [shape: f32[2,8,128], index: 3, kind: output, shape index: {}]
  %s4 = sld [smem:[#allocation0]]
  $region45: #{stacked_conv_layers.4} parent=0
    _
  %s6 = ssub.s32 1, %s4
  %s7 = scalar_select 0, %s6, %s4
  loop: start=0, step=1, limit=4
  $region2: #{stacked_conv_layers.4} parent=0 // loop_pre_header
    _
  $region3: #{stacked_conv_layers.4} parent=0 // loop_header
    %s9 = sphi 0, %s13
    %p10 = scmp.ge.s32.totalorder %s9, 4
    %s16 = sphi 0, %s28
    %s17 = sphi 0, %s24
    %s18 = sphi 0, %s16
    %s19 = sphi 0, %s17
    %s20 = sphi 0, %s18
    %s21 = sphi 0, %s19
    %s33 = sphi 0, %s35
    %s36 = sphi 0, %s33
    %s37 = sphi 0, %s36
    %s53 = sphi 0, %s37
    %s57 = sphi 0, %s57
    %s59 = sphi 0, %s57
    %s60 = sphi 0, %s59
    %s74 = sphi 0, %s60
    %s78 = sphi 0, %s78
    %s80 = sphi 0, %s78
    %s81 = sphi 0, %s80
    %s95 = sphi 0, %s81
    %s103 = sphi 0, %s105
    %s106 = sphi 0, %s103
    %s107 = sphi 0, %s106
    %s123 = sphi 0, %s107
  $region4: #{stacked_conv_layers.4} parent=0 // loop_header_branch
    %12 = sbr.rel (%p10) target = $region8
  $region5: #{stacked_conv_layers.4} parent=0 // loop_body
    %s14 = ssub.s32 %s9, 1
    %s15 = ssub.s32 %s9, 2
    %s22 = sadd.s32 1, %s17
    %p23 = scmp.ge.s32.totalorder %s22, 1
    %s24 = scalar_select %p23, 0, %s22
    %s25 = sadd.s32 1, %s16
    %s26 = scalar_select %p23, %s25, %s16
    %p27 = scmp.ge.s32.totalorder %s26, 2
    %s28 = scalar_select %p27, 0, %s26
    %s29 = ssub.s32 %s16, %s28
    %s30 = ssub.s32 %s17, %s24
    %s31 = sor.u32 %s29, %s30
    %p32 = scmp.eq.s32.totalorder %s31, 0
    %s34 = sadd.s32 %s33, 1
    %s35 = scalar_select %p32, %s33, %s34
    %p38 = pneg %p32
    %p39 = scmp.eq.s32.totalorder %s9, 1
    %p40 = por %p38, %p39
    %p41 = scmp.ne.s32.totalorder %s33, %s36
    %p42 = scmp.eq.s32.totalorder %s9, 0
    %p43 = por %p41, %p42
    %p44 = scmp.ne.s32.totalorder %s33, %s36
    %p45 = scmp.eq.s32.totalorder %s14, 1
    %p46 = por %p44, %p45
    %p47 = scmp.ne.s32.totalorder %s36, %s37
    %p48 = scmp.eq.s32.totalorder %s14, 0
    %p49 = por %p47, %p48
    %p50 = scmp.ne.s32.totalorder %s36, %s37
    %p51 = scmp.eq.s32.totalorder %s15, 1
    %p52 = por %p50, %p51
    %p54 = scmp.ne.s32.totalorder %s37, %s53
    %p55 = scmp.eq.s32.totalorder %s15, 0
    %p56 = por %p54, %p55
    %s58 = sadd.s32 %s57, 1
    %p61 = scmp.eq.s32.totalorder %s9, 1
    %p62 = scmp.ne.s32.totalorder %s57, %s59
    %p63 = scmp.eq.s32.totalorder %s9, 0
    %p64 = por %p62, %p63
    %p65 = scmp.ne.s32.totalorder %s57, %s59
    %p66 = scmp.eq.s32.totalorder %s14, 1
    %p67 = por %p65, %p66
    %p68 = scmp.ne.s32.totalorder %s59, %s60
    %p69 = scmp.eq.s32.totalorder %s14, 0
    %p70 = por %p68, %p69
    %p71 = scmp.ne.s32.totalorder %s59, %s60
    %p72 = scmp.eq.s32.totalorder %s15, 1
    %p73 = por %p71, %p72
    %p75 = scmp.ne.s32.totalorder %s60, %s74
    %p76 = scmp.eq.s32.totalorder %s15, 0
    %p77 = por %p75, %p76
    %s79 = sadd.s32 %s78, 1
    %p82 = scmp.eq.s32.totalorder %s9, 1
    %p83 = scmp.ne.s32.totalorder %s78, %s80
    %p84 = scmp.eq.s32.totalorder %s9, 0
    %p85 = por %p83, %p84
    %p86 = scmp.ne.s32.totalorder %s78, %s80
    %p87 = scmp.eq.s32.totalorder %s14, 1
    %p88 = por %p86, %p87
    %p89 = scmp.ne.s32.totalorder %s80, %s81
    %p90 = scmp.eq.s32.totalorder %s14, 0
    %p91 = por %p89, %p90
    %p92 = scmp.ne.s32.totalorder %s80, %s81
    %p93 = scmp.eq.s32.totalorder %s15, 1
    %p94 = por %p92, %p93
    %p96 = scmp.ne.s32.totalorder %s81, %s95
    %p97 = scmp.eq.s32.totalorder %s15, 0
    %p98 = por %p96, %p97
    %s99 = ssub.s32 %s16, %s28
    %s100 = ssub.s32 %s17, %s24
    %s101 = sor.u32 %s99, %s100
    %p102 = scmp.eq.s32.totalorder %s101, 0
    %s104 = sadd.s32 %s103, 1
    %s105 = scalar_select %p102, %s103, %s104
    %p108 = pneg %p102
    %p109 = scmp.eq.s32.totalorder %s9, 1
    %p110 = por %p108, %p109
    %p111 = scmp.ne.s32.totalorder %s103, %s106
    %p112 = scmp.eq.s32.totalorder %s9, 0
    %p113 = por %p111, %p112
    %p114 = scmp.ne.s32.totalorder %s103, %s106
    %p115 = scmp.eq.s32.totalorder %s14, 1
    %p116 = por %p114, %p115
    %p117 = scmp.ne.s32.totalorder %s106, %s107
    %p118 = scmp.eq.s32.totalorder %s14, 0
    %p119 = por %p117, %p118
    %p120 = scmp.ne.s32.totalorder %s106, %s107
    %p121 = scmp.eq.s32.totalorder %s15, 1
    %p122 = por %p120, %p121
    %p124 = scmp.ne.s32.totalorder %s107, %s123
    %p125 = scmp.eq.s32.totalorder %s15, 0
    %p126 = por %p124, %p125
    %p127 = scmp.le.s32.totalorder 1, %s9
    %p128 = scmp.lt.s32.totalorder %s9, 3
    %p129 = pnand %p127, %p128
    %p130 = pneg %p129
    // Predicated region
    $region9: #{stacked_conv_layers.4} parent=5 // pred_check
      _
    $region10: #{stacked_conv_layers.4} parent=5 // pred_check_branch
      %132 = sbr.rel (%p129) target = $region12
    $region11: #{stacked_conv_layers.4} parent=5 // pred_region
      %s133 = ssub.s32 %s9, 1
      // Predicated region
      $region13: #{stacked_conv_layers.4} parent=11 // pred_check
        %p134 = pneg %p70
      $region14: #{stacked_conv_layers.4} parent=11 // pred_check_branch
        %136 = sbr.rel (%p134) target = $region16
      $region15: #{stacked_conv_layers.4} parent=11 // pred_region
        _
      $region16: #{stacked_conv_layers.4} parent=11 // pred_fallthru
        _
      // Predicated region
      $region17: #{stacked_conv_layers.4} parent=11 // pred_check
        %p137 = pneg %p91
      $region18: #{stacked_conv_layers.4} parent=11 // pred_check_branch
        %139 = sbr.rel (%p137) target = $region20
      $region19: #{stacked_conv_layers.4} parent=11 // pred_region
        _
      $region20: #{stacked_conv_layers.4} parent=11 // pred_fallthru
        _
    $region12: #{stacked_conv_layers.4} parent=5 // pred_fallthru
      _
    %p140 = scmp.lt.s32.totalorder %s9, 2
    // Predicated region
    $region21: #{stacked_conv_layers.4} parent=5 // pred_check
      %p141 = pneg %p140
    $region22: #{stacked_conv_layers.4} parent=5 // pred_check_branch
      %143 = sbr.rel (%p141) target = $region24
    $region23: #{stacked_conv_layers.4} parent=5 // pred_region
      // Predicated region
      $region25: #{stacked_conv_layers.4} parent=23 // pred_check
        %p144 = pneg %p43
      $region26: #{stacked_conv_layers.4} parent=23 // pred_check_branch
        %146 = sbr.rel (%p144) target = $region28
      $region27: #{stacked_conv_layers.4} parent=23 // pred_region
        %p147 = scmp.lt.s32.totalorder %s16, 1
        %s148 = scalar_select %p147, %s16, 1
        %p149 = scmp.lt.s32.totalorder %s17, 0
        %s150 = scalar_select %p149, %s17, 0
        %s151 = smul.addr %s148, 14
        %s152 = sadd.s32 %s150, %s151
        %s153 = smul.addr %s152, 8
        %s154 = scalar_lea.vmem %s0, %s153
      $region28: #{stacked_conv_layers.4} parent=23 // pred_fallthru
        _
    $region24: #{stacked_conv_layers.4} parent=5 // pred_fallthru
      _
    %p155 = scmp.le.s32.totalorder 1, %s9
    %p156 = scmp.lt.s32.totalorder %s9, 3
    %p157 = pnand %p155, %p156
    %p158 = pneg %p157
    // Predicated region
    $region29: #{stacked_conv_layers.4} parent=5 // pred_check
      _
    $region30: #{stacked_conv_layers.4} parent=5 // pred_check_branch
      %160 = sbr.rel (%p157) target = $region32
    $region31: #{stacked_conv_layers.4} parent=5 // pred_region
      %s161 = ssub.s32 %s9, 1
      %p162 = scmp.lt.s32.totalorder %s18, 1
      %s163 = scalar_select %p162, %s18, 1
      %p164 = scmp.lt.s32.totalorder %s19, 0
      %s165 = scalar_select %p164, %s19, 0
      %s166 = smul.addr %s163, 14
      %s167 = sadd.s32 %s165, %s166
      %s168 = smul.addr %s167, 8
      %s169 = scalar_lea.vmem %s0, %s168
      %p170 = pneg %p49
      %p171 = pneg %p46
      %p172 = pneg %p70
      %p173 = pneg %p67
      %p174 = pneg %p91
      %p175 = pneg %p88
      %p176 = pneg %p119
      %p177 = pneg %p116
      %p178 = scmp.lt.s32.totalorder %s18, 1
      %s179 = scalar_select %p178, %s18, 1
      %p180 = scmp.lt.s32.totalorder %s19, 0
      %s181 = scalar_select %p180, %s19, 0
      %s182 = sadd.s32 %s181, %s179
      %s183 = smul.addr %s182, 8
      %s184 = scalar_lea.vmem %s3, %s183
      %p185 = scmp.lt.s32.totalorder %s18, 1
      %s186 = scalar_select %p185, %s18, 1
      %p187 = scmp.lt.s32.totalorder %s19, 0
      %s188 = scalar_select %p187, %s19, 0
      %s189 = smul.addr %s186, 14
      %s190 = sadd.s32 %s188, %s189
      %s191 = smul.addr %s190, 8
      %s192 = scalar_lea.vmem %s0, %s191
      %p193 = scmp.lt.s32.totalorder %s18, 1
      %s194 = scalar_select %p193, %s18, 1
      %p195 = scmp.lt.s32.totalorder %s19, 0
      %s196 = scalar_select %p195, %s19, 0
      %s197 = sadd.s32 %s196, %s194
      %s198 = smul.addr %s197, 8
      %s199 = scalar_lea.vmem %s3, %s198
      %v200 = vld [vmem:[%s1] sm:$0xff]
      %v201 = vld [vmem:[%s192] sm:$0xff]
      %v202 = vld [vmem:[%s192 + $0x8] sm:$0xff]
      %v203 = vld [vmem:[%s192 + $0x10] sm:$0xff]
      %v204 = vld [vmem:[%s192 + $0x18] sm:$0xff]
      %v205 = vld [vmem:[%s192 + $0x20] sm:$0xff]
      %v206 = vld [vmem:[%s192 + $0x28] sm:$0xff]
      %v207 = vld [vmem:[%s192 + $0x30] sm:$0xff]
      %v208 = vld [vmem:[%s192 + $0x38] sm:$0xff]
      %v209 = vld [vmem:[%s192 + $0x40] sm:$0xff]
      %v210 = vld [vmem:[%s192 + $0x48] sm:$0xff]
      %v211 = vld [vmem:[%s192 + $0x50] sm:$0xff]
      %v212 = vld [vmem:[%s192 + $0x58] sm:$0xff]
      %v213 = vld [vmem:[%s192 + $0x60] sm:$0xff]
      %v214 = vld [vmem:[%s192 + $0x68] sm:$0xff]
      %v215 = vld [vmem:[%s2] sm:$0xff]
      %217 = vset.pattern.permute.xlu0 0
      %218 = vperm.xlu0 %217, %v215
      %v219 = vpop.permute.xlu0 %218
      %vm221 = vcmask 916480
      %v223 = vsel %vm221, %v200, 0
      %225 = vmatprep.subr.mxu0 0.0
      %226 = vmatpush1.msra.mxu0 0.0
      %227 = vmatprep.subr.mxu0 0.0
      %228 = vmatpush1.msra.mxu0 0.0
      %229 = vmatprep.subr.mxu0 0.0
      %230 = vmatpush1.msra.mxu0 %v214
      %231 = vmatprep.subr.mxu0 0.0
      %232 = vmatpush1.msra.mxu0 %v213
      %233 = vmatprep.subr.mxu0 0.0
      %234 = vmatpush1.msra.mxu0 %v212
      %235 = vmatprep.subr.mxu0 0.0
      %236 = vmatpush1.msra.mxu0 %v211
      %237 = vmatprep.subr.mxu0 0.0
      %238 = vmatpush1.msra.mxu0 %v210
      %239 = vmatprep.subr.mxu0 0.0
      %240 = vmatpush1.msra.mxu0 %v209
      %241 = vmatprep.subr.mxu0 0.0
      %242 = vmatpush1.msra.mxu0 %v208
      %243 = vmatprep.subr.mxu0 0.0
      %244 = vmatpush1.msra.mxu0 %v207
      %245 = vmatprep.subr.mxu0 0.0
      %246 = vmatpush1.msra.mxu0 %v206
      %247 = vmatprep.subr.mxu0 0.0
      %248 = vmatpush1.msra.mxu0 %v205
      %249 = vmatprep.subr.mxu0 0.0
      %250 = vmatpush1.msra.mxu0 %v204
      %251 = vmatprep.subr.mxu0 0.0
      %252 = vmatpush1.msra.mxu0 %v203
      %253 = vmatprep.subr.mxu0 0.0
      %254 = vmatpush1.msra.mxu0 %v202
      %255 = vmatprep.subr.mxu0 0.0
      %256 = vmatpush1.msra.mxu0 %v201
      %257 = vmatprep.subr.mxu0 0.0
      %258 = vmatpush2.msra.mxu0 0.0
      %259 = vmatprep.subr.mxu0 0.0
      %260 = vmatpush2.msra.mxu0 0.0
      %261 = vmatprep.subr.mxu0 0.0
      %262 = vmatpush2.msra.mxu0 0.0
      %263 = vmatprep.subr.mxu0 0.0
      %264 = vmatpush2.msra.mxu0 0.0
      %265 = vmatprep.subr.mxu0 0.0
      %266 = vmatpush2.msra.mxu0 0.0
      %267 = vmatprep.subr.mxu0 0.0
      %268 = vmatpush2.msra.mxu0 0.0
      %269 = vmatprep.subr.mxu0 0.0
      %270 = vmatpush2.msra.mxu0 0.0
      %271 = vmatprep.subr.mxu0 0.0
      %272 = vmatpush2.msra.mxu0 0.0
      %273 = vmatprep.subr.mxu0 0.0
      %274 = vmatpush2.msra.mxu0 0.0
      %275 = vmatprep.subr.mxu0 0.0
      %276 = vmatpush2.msra.mxu0 0.0
      %277 = vmatprep.subr.mxu0 0.0
      %278 = vmatpush2.msra.mxu0 0.0
      %279 = vmatprep.subr.mxu0 0.0
      %280 = vmatpush2.msra.mxu0 0.0
      %281 = vmatprep.subr.mxu0 0.0
      %282 = vmatpush2.msra.mxu0 0.0
      %283 = vmatprep.subr.mxu0 0.0
      %284 = vmatpush2.msra.mxu0 0.0
      %285 = vmatprep.subr.mxu0 0.0
      %286 = vmatpush2.msra.mxu0 0.0
      %287 = vmatprep.subr.mxu0 0.0
      %288 = vmatpush2.msra.mxu0 0.0
      %289 = vmatprep.mubr.f32.mxu0 0.0
      %290 = vmatmul.mubr.f32.gmra.mxu0 %v223
      %v291 = vpop.f32.mrf.mxu0
      %v292 = vadd.f32 %v219, %v291
      %v293 = vpop.f32.mrf.mxu0
      %294 = vdwg.mxu0
      %295 = vst [vmem:[%s199] sm:$0xff] %v292
      %p296 = scmp.lt.s32.totalorder %s18, 1
      %s297 = scalar_select %p296, %s18, 1
      %p298 = scmp.lt.s32.totalorder %s19, 0
      %s299 = scalar_select %p298, %s19, 0
      %s300 = sadd.s32 %s299, %s297
      %s301 = smul.addr %s300, 8
      %s302 = scalar_lea.vmem %s3, %s301
      // Predicated region
      $region33: #{stacked_conv_layers.4} parent=31 // pred_check
        %p303 = pneg %p116
      $region34: #{stacked_conv_layers.4} parent=31 // pred_check_branch
        %305 = sbr.rel (%p303) target = $region36
      $region35: #{stacked_conv_layers.4} parent=31 // pred_region
        _
      $region36: #{stacked_conv_layers.4} parent=31 // pred_fallthru
        _
    $region32: #{stacked_conv_layers.4} parent=5 // pred_fallthru
      _
    %p306 = scmp.le.s32.totalorder 2, %s9
    // Predicated region
    $region37: #{stacked_conv_layers.4} parent=5 // pred_check
      %p307 = pneg %p306
    $region38: #{stacked_conv_layers.4} parent=5 // pred_check_branch
      %309 = sbr.rel (%p307) target = $region40
    $region39: #{stacked_conv_layers.4} parent=5 // pred_region
      %s310 = ssub.s32 %s9, 2
      // Predicated region
      $region41: #{stacked_conv_layers.4} parent=39 // pred_check
        %p311 = pneg %p122
      $region42: #{stacked_conv_layers.4} parent=39 // pred_check_branch
        %313 = sbr.rel (%p311) target = $region44
      $region43: #{stacked_conv_layers.4} parent=39 // pred_region
        %p314 = scmp.lt.s32.totalorder %s20, 1
        %s315 = scalar_select %p314, %s20, 1
        %p316 = scmp.lt.s32.totalorder %s21, 0
        %s317 = scalar_select %p316, %s21, 0
        %s318 = sadd.s32 %s317, %s315
        %s319 = smul.addr %s318, 8
        %s320 = scalar_lea.vmem %s3, %s319
      $region44: #{stacked_conv_layers.4} parent=39 // pred_fallthru
        _
    $region40: #{stacked_conv_layers.4} parent=5 // pred_fallthru
      _
  $region6: #{stacked_conv_layers.4} parent=0 // loop_footer
    %s13 = sadd.s32 1, %s9
  $region7: #{stacked_conv_layers.4} parent=0 // loop_footer_branch
    %8 = sbr.rel target = $region3
  $region8: #{stacked_conv_layers.4} parent=0 // loop_exit
    _

// kernel: stacked_conv_layers.5
$region0: #{stacked_conv_layers.5}
  #allocation0 [shape = 'u32[]', space=smem, size = 0x4, offset = 0x4, fixed_abs, tag = 'smem constant byte address 0x4 - core index']
  #allocation1 [shape = 'u32[144,128]{1,0:T(1,128)}', space=vmem, size = 0x12000, scoped, tag = 'internal scratch']
  #allocation2 [shape = 'f32[8,128]{1,0:T(8,128)}', space=vmem, size = 0x1000, scoped, tag = 'scratch operand']
  #allocation3 [shape = 'f32[8,128]{1,0:T(8,128)}', space=vmem, size = 0x1000, scoped, tag = 'scratch operand']
  #allocation4 [shape = 'f32[8,1]{1,0:T(8,128)}', space=vmem, size = 0x1000, scoped, tag = 'scratch operand']
  #allocation5 [shape = 'f32[8,1]{1,0:T(8,128)}', space=vmem, size = 0x1000, scoped, tag = 'scratch operand']
  %s0 = inlined_call_operand.vmem [shape: f32[2,8,128], index: 0, kind: input, shape index: {}]
  %s1 = inlined_call_operand.vmem [shape: f32[8,1], index: 1, kind: input, shape index: {}]
  %s2 = inlined_call_operand.vmem [shape: f32[8,1], index: 2, kind: input, shape index: {}]
  %s3 = inlined_call_operand.vmem [shape: f32[2,8,128], index: 3, kind: output, shape index: {}]
  %s4 = sld [smem:[#allocation0]]
  $region61: #{stacked_conv_layers.5} parent=0
    _
  %s6 = ssub.s32 1, %s4
  %s7 = scalar_select 0, %s6, %s4
  loop: start=0, step=1, limit=6
  $region2: #{stacked_conv_layers.5} parent=0 // loop_pre_header
    _
  $region3: #{stacked_conv_layers.5} parent=0 // loop_header
    %s9 = sphi 0, %s13
    %p10 = scmp.ge.s32.totalorder %s9, 6
    %s16 = sphi 0, %s35
    %s17 = sphi 0, %s31
    %s18 = sphi 0, %s27
    %s19 = sphi 0, %s16
    %s20 = sphi 0, %s17
    %s21 = sphi 0, %s18
    %s22 = sphi 0, %s19
    %s23 = sphi 0, %s20
    %s24 = sphi 0, %s21
    %s40 = sphi 0, %s42
    %s43 = sphi 0, %s40
    %s44 = sphi 0, %s43
    %s60 = sphi 0, %s44
    %s64 = sphi 0, %s64
    %s66 = sphi 0, %s64
    %s67 = sphi 0, %s66
    %s81 = sphi 0, %s67
    %s85 = sphi 0, %s85
    %s87 = sphi 0, %s85
    %s88 = sphi 0, %s87
    %s102 = sphi 0, %s88
    %s112 = sphi 0, %s114
    %s115 = sphi 0, %s112
    %s116 = sphi 0, %s115
    %s132 = sphi 0, %s116
  $region4: #{stacked_conv_layers.5} parent=0 // loop_header_branch
    %12 = sbr.rel (%p10) target = $region8
  $region5: #{stacked_conv_layers.5} parent=0 // loop_body
    %s14 = ssub.s32 %s9, 1
    %s15 = ssub.s32 %s9, 2
    %s25 = sadd.s32 1, %s18
    %p26 = scmp.ge.s32.totalorder %s25, 1
    %s27 = scalar_select %p26, 0, %s25
    %s28 = sadd.s32 1, %s17
    %s29 = scalar_select %p26, %s28, %s17
    %p30 = scmp.ge.s32.totalorder %s29, 2
    %s31 = scalar_select %p30, 0, %s29
    %s32 = sadd.s32 1, %s16
    %s33 = scalar_select %p30, %s32, %s16
    %p34 = scmp.ge.s32.totalorder %s33, 2
    %s35 = scalar_select %p34, 0, %s33
    %s36 = ssub.s32 %s16, %s35
    %s37 = ssub.s32 %s18, %s27
    %s38 = sor.u32 %s36, %s37
    %p39 = scmp.eq.s32.totalorder %s38, 0
    %s41 = sadd.s32 %s40, 1
    %s42 = scalar_select %p39, %s40, %s41
    %p45 = pneg %p39
    %p46 = scmp.eq.s32.totalorder %s9, 3
    %p47 = por %p45, %p46
    %p48 = scmp.ne.s32.totalorder %s40, %s43
    %p49 = scmp.eq.s32.totalorder %s9, 0
    %p50 = por %p48, %p49
    %p51 = scmp.ne.s32.totalorder %s40, %s43
    %p52 = scmp.eq.s32.totalorder %s14, 3
    %p53 = por %p51, %p52
    %p54 = scmp.ne.s32.totalorder %s43, %s44
    %p55 = scmp.eq.s32.totalorder %s14, 0
    %p56 = por %p54, %p55
    %p57 = scmp.ne.s32.totalorder %s43, %s44
    %p58 = scmp.eq.s32.totalorder %s15, 3
    %p59 = por %p57, %p58
    %p61 = scmp.ne.s32.totalorder %s44, %s60
    %p62 = scmp.eq.s32.totalorder %s15, 0
    %p63 = por %p61, %p62
    %s65 = sadd.s32 %s64, 1
    %p68 = scmp.eq.s32.totalorder %s9, 3
    %p69 = scmp.ne.s32.totalorder %s64, %s66
    %p70 = scmp.eq.s32.totalorder %s9, 0
    %p71 = por %p69, %p70
    %p72 = scmp.ne.s32.totalorder %s64, %s66
    %p73 = scmp.eq.s32.totalorder %s14, 3
    %p74 = por %p72, %p73
    %p75 = scmp.ne.s32.totalorder %s66, %s67
    %p76 = scmp.eq.s32.totalorder %s14, 0
    %p77 = por %p75, %p76
    %p78 = scmp.ne.s32.totalorder %s66, %s67
    %p79 = scmp.eq.s32.totalorder %s15, 3
    %p80 = por %p78, %p79
    %p82 = scmp.ne.s32.totalorder %s67, %s81
    %p83 = scmp.eq.s32.totalorder %s15, 0
    %p84 = por %p82, %p83
    %s86 = sadd.s32 %s85, 1
    %p89 = scmp.eq.s32.totalorder %s9, 3
    %p90 = scmp.ne.s32.totalorder %s85, %s87
    %p91 = scmp.eq.s32.totalorder %s9, 0
    %p92 = por %p90, %p91
    %p93 = scmp.ne.s32.totalorder %s85, %s87
    %p94 = scmp.eq.s32.totalorder %s14, 3
    %p95 = por %p93, %p94
    %p96 = scmp.ne.s32.totalorder %s87, %s88
    %p97 = scmp.eq.s32.totalorder %s14, 0
    %p98 = por %p96, %p97
    %p99 = scmp.ne.s32.totalorder %s87, %s88
    %p100 = scmp.eq.s32.totalorder %s15, 3
    %p101 = por %p99, %p100
    %p103 = scmp.ne.s32.totalorder %s88, %s102
    %p104 = scmp.eq.s32.totalorder %s15, 0
    %p105 = por %p103, %p104
    %s106 = smul.u32 %s18, %s17
    %s107 = smul.u32 %s27, %s31
    %s108 = ssub.s32 %s16, %s35
    %s109 = ssub.s32 %s106, %s107
    %s110 = sor.u32 %s108, %s109
    %p111 = scmp.eq.s32.totalorder %s110, 0
    %s113 = sadd.s32 %s112, 1
    %s114 = scalar_select %p111, %s112, %s113
    %p117 = pneg %p111
    %p118 = scmp.eq.s32.totalorder %s9, 3
    %p119 = por %p117, %p118
    %p120 = scmp.ne.s32.totalorder %s112, %s115
    %p121 = scmp.eq.s32.totalorder %s9, 0
    %p122 = por %p120, %p121
    %p123 = scmp.ne.s32.totalorder %s112, %s115
    %p124 = scmp.eq.s32.totalorder %s14, 3
    %p125 = por %p123, %p124
    %p126 = scmp.ne.s32.totalorder %s115, %s116
    %p127 = scmp.eq.s32.totalorder %s14, 0
    %p128 = por %p126, %p127
    %p129 = scmp.ne.s32.totalorder %s115, %s116
    %p130 = scmp.eq.s32.totalorder %s15, 3
    %p131 = por %p129, %p130
    %p133 = scmp.ne.s32.totalorder %s116, %s132
    %p134 = scmp.eq.s32.totalorder %s15, 0
    %p135 = por %p133, %p134
    %p136 = scmp.le.s32.totalorder 1, %s9
    %p137 = scmp.lt.s32.totalorder %s9, 5
    %p138 = pnand %p136, %p137
    %p139 = pneg %p138
    // Predicated region
    $region9: #{stacked_conv_layers.5} parent=5 // pred_check
      _
    $region10: #{stacked_conv_layers.5} parent=5 // pred_check_branch
      %141 = sbr.rel (%p138) target = $region12
    $region11: #{stacked_conv_layers.5} parent=5 // pred_region
      %s142 = ssub.s32 %s9, 1
      // Predicated region
      $region13: #{stacked_conv_layers.5} parent=11 // pred_check
        %p143 = pneg %p77
      $region14: #{stacked_conv_layers.5} parent=11 // pred_check_branch
        %145 = sbr.rel (%p143) target = $region16
      $region15: #{stacked_conv_layers.5} parent=11 // pred_region
        _
      $region16: #{stacked_conv_layers.5} parent=11 // pred_fallthru
        _
      // Predicated region
      $region17: #{stacked_conv_layers.5} parent=11 // pred_check
        %p146 = pneg %p98
      $region18: #{stacked_conv_layers.5} parent=11 // pred_check_branch
        %148 = sbr.rel (%p146) target = $region20
      $region19: #{stacked_conv_layers.5} parent=11 // pred_region
        _
      $region20: #{stacked_conv_layers.5} parent=11 // pred_fallthru
        _
    $region12: #{stacked_conv_layers.5} parent=5 // pred_fallthru
      _
    %p149 = scmp.lt.s32.totalorder %s9, 4
    // Predicated region
    $region21: #{stacked_conv_layers.5} parent=5 // pred_check
      %p150 = pneg %p149
    $region22: #{stacked_conv_layers.5} parent=5 // pred_check_branch
      %152 = sbr.rel (%p150) target = $region24
    $region23: #{stacked_conv_layers.5} parent=5 // pred_region
      // Predicated region
      $region25: #{stacked_conv_layers.5} parent=23 // pred_check
        %p153 = pneg %p50
      $region26: #{stacked_conv_layers.5} parent=23 // pred_check_branch
        %155 = sbr.rel (%p153) target = $region28
      $region27: #{stacked_conv_layers.5} parent=23 // pred_region
        %p156 = scmp.lt.s32.totalorder %s16, 1
        %s157 = scalar_select %p156, %s16, 1
        %p158 = scmp.lt.s32.totalorder %s18, 0
        %s159 = scalar_select %p158, %s18, 0
        %s160 = sadd.s32 %s159, %s157
        %s161 = smul.addr %s160, 8
        %s162 = scalar_lea.vmem %s0, %s161
      $region28: #{stacked_conv_layers.5} parent=23 // pred_fallthru
        _
    $region24: #{stacked_conv_layers.5} parent=5 // pred_fallthru
      _
    %p163 = scmp.le.s32.totalorder 1, %s9
    %p164 = scmp.lt.s32.totalorder %s9, 5
    %p165 = pnand %p163, %p164
    %p166 = pneg %p165
    // Predicated region
    $region29: #{stacked_conv_layers.5} parent=5 // pred_check
      _
    $region30: #{stacked_conv_layers.5} parent=5 // pred_check_branch
      %168 = sbr.rel (%p165) target = $region32
    $region31: #{stacked_conv_layers.5} parent=5 // pred_region
      %s169 = ssub.s32 %s9, 1
      %p170 = scmp.lt.s32.totalorder %s19, 1
      %s171 = scalar_select %p170, %s19, 1
      %p172 = scmp.lt.s32.totalorder %s21, 0
      %s173 = scalar_select %p172, %s21, 0
      %s174 = sadd.s32 %s173, %s171
      %s175 = smul.addr %s174, 8
      %s176 = scalar_lea.vmem %s0, %s175
      %p177 = pneg %p56
      %p178 = pneg %p53
      %p179 = pneg %p77
      %p180 = pneg %p74
      %p181 = pneg %p98
      %p182 = pneg %p95
      %p183 = pneg %p128
      %p184 = pneg %p125
      %s185 = smul.u32 %s21, %s20
      %p186 = scmp.lt.s32.totalorder %s19, 1
      %s187 = scalar_select %p186, %s19, 1
      %p188 = scmp.lt.s32.totalorder %s185, 0
      %s189 = scalar_select %p188, %s185, 0
      %s190 = sadd.s32 %s189, %s187
      %s191 = smul.addr %s190, 8
      %s192 = scalar_lea.vmem %s3, %s191
      %p193 = scmp.lt.s32.totalorder %s19, 1
      %s194 = scalar_select %p193, %s19, 1
      %p195 = scmp.lt.s32.totalorder %s21, 0
      %s196 = scalar_select %p195, %s21, 0
      %s197 = sadd.s32 %s196, %s194
      %s198 = smul.addr %s197, 8
      %s199 = scalar_lea.vmem %s0, %s198
      %s200 = smul.u32 %s21, %s20
      %p201 = scmp.lt.s32.totalorder %s19, 1
      %s202 = scalar_select %p201, %s19, 1
      %p203 = scmp.lt.s32.totalorder %s200, 0
      %s204 = scalar_select %p203, %s200, 0
      %s205 = sadd.s32 %s204, %s202
      %s206 = smul.addr %s205, 8
      %s207 = scalar_lea.vmem %s3, %s206
      %s208 = smul.u32 %s21, %s20
      %v209 = vld [vmem:[%s199] sm:$0xff]
      %p210 = scmp.eq.s32.totalorder %s20, 0
      %p211 = scmp.eq.s32.totalorder %s21, 0
      %p212 = pnand %p210, %p211
      %p213 = pneg %p212
      // Predicated region
      $region33: #{stacked_conv_layers.5} parent=31 // pred_check
        _
      $region34: #{stacked_conv_layers.5} parent=31 // pred_check_branch
        %215 = sbr.rel (%p212) target = $region36
      $region35: #{stacked_conv_layers.5} parent=31 // pred_region
        %216 = vst [vmem:[#allocation2] sm:$0xff] 0.0
        %217 = vst [vmem:[#allocation3] sm:$0xff] 0.0
      $region36: #{stacked_conv_layers.5} parent=31 // pred_fallthru
        _
      // Predicated region
      $region37: #{stacked_conv_layers.5} parent=31 // pred_check
        %p218 = pneg %p210
      $region38: #{stacked_conv_layers.5} parent=31 // pred_check_branch
        %220 = sbr.rel (%p218) target = $region40
      $region39: #{stacked_conv_layers.5} parent=31 // pred_region
        %v221 = vlaneseq
        %v222 = vand.u32 %v221, 127
        %s223 = smul.u32 %s21, 128
        %v224 = vstv %s223
        %v225 = vadd.s32 %v222, %v224
        %vm226 = vcmp.lt.s32.totalorder %v225, 64
        %v227 = vsel %vm226, %v209, 0.0
        %v228 = vld [vmem:[#allocation2] sm:$0xff]
        %v229 = vadd.f32 %v228, %v227
        %230 = vst [vmem:[#allocation2] sm:$0xff] %v229
        %v231 = vld [vmem:[#allocation3] sm:$0xff]
        %v232 = vmul.f32 %v227, %v227
        %v233 = vadd.f32 %v231, %v232
        %234 = vst [vmem:[#allocation3] sm:$0xff] %v233
      $region40: #{stacked_conv_layers.5} parent=31 // pred_fallthru
        _
      %p235 = scmp.eq.s32.totalorder %s20, 1
      %p236 = pnand %p235, %p211
      %p237 = pneg %p236
      // Predicated region
      $region41: #{stacked_conv_layers.5} parent=31 // pred_check
        _
      $region42: #{stacked_conv_layers.5} parent=31 // pred_check_branch
        %239 = sbr.rel (%p236) target = $region44
      $region43: #{stacked_conv_layers.5} parent=31 // pred_region
        %v240 = vld [vmem:[#allocation2] sm:$0xff]
        %241 = vadd.xlane.f32.xlu0 %v240
        %v242 = vpop.xlane.xlu0 %241
        %v243 = vmul.f32 %v242, 0.015625
        %v244 = vld [vmem:[#allocation3] sm:$0xff]
        %245 = vadd.xlane.f32.xlu0 %v244
        %v246 = vpop.xlane.xlu0 %245
        %v247 = vmul.f32 %v246, 0.015625
        %v248 = vmul.f32 %v243, %v243
        %v249 = vsub.f32 %v247, %v248
        %v250 = vmax.f32 %v249, 0.0
        %v251 = vld [vmem:[%s1] sm:$0xff]
        %v252 = vadd.f32 %v250, 1e-05
        %v253 = vrsqrt.pop %v252
        %v254 = vmul.f32 %v251, %v253
        %vm255 = vcmask 7168
        %256 = vst.msk [vmem:[#allocation4] sm:$0xff] %vm255, %v254
        %v257 = vld [vmem:[%s2] sm:$0xff]
        %v258 = vmul.f32 %v243, %v254
        %v259 = vsub.f32 %v257, %v258
        %260 = vst.msk [vmem:[#allocation5] sm:$0xff] %vm255, %v259
      $region44: #{stacked_conv_layers.5} parent=31 // pred_fallthru
        _
      // Predicated region
      $region45: #{stacked_conv_layers.5} parent=31 // pred_check
        %p261 = pneg %p235
      $region46: #{stacked_conv_layers.5} parent=31 // pred_check_branch
        %263 = sbr.rel (%p261) target = $region48
      $region47: #{stacked_conv_layers.5} parent=31 // pred_region
        %v264 = vld [vmem:[#allocation4] sm:$0xff]
        %266 = vset.pattern.permute.xlu0 0
        %267 = vperm.xlu0 %266, %v264
        %v268 = vpop.permute.xlu0 %267
        %v270 = vmul.f32 %v209, %v268
        %v271 = vld [vmem:[#allocation5] sm:$0xff]
        %273 = vset.pattern.permute.xlu0 0
        %274 = vperm.xlu0 %273, %v271
        %v275 = vpop.permute.xlu0 %274
        %v277 = vadd.f32 %v270, %v275
        %vm278 = vcmp.ge.f32.partialorder %v277, 0.0
        %v279 = vmul.f32 %v277, 0.01
        %v280 = vsel %vm278, %v277, %v279
        %281 = vst [vmem:[%s207] sm:$0xff] %v280
      $region48: #{stacked_conv_layers.5} parent=31 // pred_fallthru
        _
      %s282 = smul.u32 %s21, %s20
      %p283 = scmp.lt.s32.totalorder %s19, 1
      %s284 = scalar_select %p283, %s19, 1
      %p285 = scmp.lt.s32.totalorder %s282, 0
      %s286 = scalar_select %p285, %s282, 0
      %s287 = sadd.s32 %s286, %s284
      %s288 = smul.addr %s287, 8
      %s289 = scalar_lea.vmem %s3, %s288
      // Predicated region
      $region49: #{stacked_conv_layers.5} parent=31 // pred_check
        %p290 = pneg %p125
      $region50: #{stacked_conv_layers.5} parent=31 // pred_check_branch
        %292 = sbr.rel (%p290) target = $region52
      $region51: #{stacked_conv_layers.5} parent=31 // pred_region
        %s293 = smul.u32 %s21, %s20
      $region52: #{stacked_conv_layers.5} parent=31 // pred_fallthru
        _
    $region32: #{stacked_conv_layers.5} parent=5 // pred_fallthru
      _
    %p294 = scmp.le.s32.totalorder 2, %s9
    // Predicated region
    $region53: #{stacked_conv_layers.5} parent=5 // pred_check
      %p295 = pneg %p294
    $region54: #{stacked_conv_layers.5} parent=5 // pred_check_branch
      %297 = sbr.rel (%p295) target = $region56
    $region55: #{stacked_conv_layers.5} parent=5 // pred_region
      %s298 = ssub.s32 %s9, 2
      // Predicated region
      $region57: #{stacked_conv_layers.5} parent=55 // pred_check
        %p299 = pneg %p131
      $region58: #{stacked_conv_layers.5} parent=55 // pred_check_branch
        %301 = sbr.rel (%p299) target = $region60
      $region59: #{stacked_conv_layers.5} parent=55 // pred_region
        %s302 = smul.u32 %s24, %s23
        %p303 = scmp.lt.s32.totalorder %s22, 1
        %s304 = scalar_select %p303, %s22, 1
        %p305 = scmp.lt.s32.totalorder %s302, 0
        %s306 = scalar_select %p305, %s302, 0
        %s307 = sadd.s32 %s306, %s304
        %s308 = smul.addr %s307, 8
        %s309 = scalar_lea.vmem %s3, %s308
      $region60: #{stacked_conv_layers.5} parent=55 // pred_fallthru
        _
    $region56: #{stacked_conv_layers.5} parent=5 // pred_fallthru
      _
  $region6: #{stacked_conv_layers.5} parent=0 // loop_footer
    %s13 = sadd.s32 1, %s9
  $region7: #{stacked_conv_layers.5} parent=0 // loop_footer_branch
    %8 = sbr.rel target = $region3
  $region8: #{stacked_conv_layers.5} parent=0 // loop_exit
    _

// kernel: stacked_conv_layers.6
$region0: #{stacked_conv_layers.6}
  #allocation0 [shape = 'u32[]', space=smem, size = 0x4, offset = 0x4, fixed_abs, tag = 'smem constant byte address 0x4 - core index']
  #allocation1 [shape = 'u32[144,128]{1,0:T(1,128)}', space=vmem, size = 0x12000, scoped, tag = 'internal scratch']
  %s0 = inlined_call_operand.vmem [shape: f32[2,216,128], index: 0, kind: input, shape index: {}]
  %s1 = inlined_call_operand.vmem [shape: f32[8,216], index: 1, kind: input, shape index: {}]
  %s2 = inlined_call_operand.vmem [shape: f32[8,1], index: 2, kind: input, shape index: {}]
  %s3 = inlined_call_operand.vmem [shape: f32[2,8,128], index: 3, kind: output, shape index: {}]
  %s4 = sld [smem:[#allocation0]]
  $region45: #{stacked_conv_layers.6} parent=0
    _
  %s6 = ssub.s32 1, %s4
  %s7 = scalar_select 0, %s6, %s4
  loop: start=0, step=1, limit=4
  $region2: #{stacked_conv_layers.6} parent=0 // loop_pre_header
    _
  $region3: #{stacked_conv_layers.6} parent=0 // loop_header
    %s9 = sphi 0, %s13
    %p10 = scmp.ge.s32.totalorder %s9, 4
    %s16 = sphi 0, %s28
    %s17 = sphi 0, %s24
    %s18 = sphi 0, %s16
    %s19 = sphi 0, %s17
    %s20 = sphi 0, %s18
    %s21 = sphi 0, %s19
    %s33 = sphi 0, %s35
    %s36 = sphi 0, %s33
    %s37 = sphi 0, %s36
    %s53 = sphi 0, %s37
    %s57 = sphi 0, %s57
    %s59 = sphi 0, %s57
    %s60 = sphi 0, %s59
    %s74 = sphi 0, %s60
    %s78 = sphi 0, %s78
    %s80 = sphi 0, %s78
    %s81 = sphi 0, %s80
    %s95 = sphi 0, %s81
    %s103 = sphi 0, %s105
    %s106 = sphi 0, %s103
    %s107 = sphi 0, %s106
    %s123 = sphi 0, %s107
  $region4: #{stacked_conv_layers.6} parent=0 // loop_header_branch
    %12 = sbr.rel (%p10) target = $region8
  $region5: #{stacked_conv_layers.6} parent=0 // loop_body
    %s14 = ssub.s32 %s9, 1
    %s15 = ssub.s32 %s9, 2
    %s22 = sadd.s32 1, %s17
    %p23 = scmp.ge.s32.totalorder %s22, 1
    %s24 = scalar_select %p23, 0, %s22
    %s25 = sadd.s32 1, %s16
    %s26 = scalar_select %p23, %s25, %s16
    %p27 = scmp.ge.s32.totalorder %s26, 2
    %s28 = scalar_select %p27, 0, %s26
    %s29 = ssub.s32 %s16, %s28
    %s30 = ssub.s32 %s17, %s24
    %s31 = sor.u32 %s29, %s30
    %p32 = scmp.eq.s32.totalorder %s31, 0
    %s34 = sadd.s32 %s33, 1
    %s35 = scalar_select %p32, %s33, %s34
    %p38 = pneg %p32
    %p39 = scmp.eq.s32.totalorder %s9, 1
    %p40 = por %p38, %p39
    %p41 = scmp.ne.s32.totalorder %s33, %s36
    %p42 = scmp.eq.s32.totalorder %s9, 0
    %p43 = por %p41, %p42
    %p44 = scmp.ne.s32.totalorder %s33, %s36
    %p45 = scmp.eq.s32.totalorder %s14, 1
    %p46 = por %p44, %p45
    %p47 = scmp.ne.s32.totalorder %s36, %s37
    %p48 = scmp.eq.s32.totalorder %s14, 0
    %p49 = por %p47, %p48
    %p50 = scmp.ne.s32.totalorder %s36, %s37
    %p51 = scmp.eq.s32.totalorder %s15, 1
    %p52 = por %p50, %p51
    %p54 = scmp.ne.s32.totalorder %s37, %s53
    %p55 = scmp.eq.s32.totalorder %s15, 0
    %p56 = por %p54, %p55
    %s58 = sadd.s32 %s57, 1
    %p61 = scmp.eq.s32.totalorder %s9, 1
    %p62 = scmp.ne.s32.totalorder %s57, %s59
    %p63 = scmp.eq.s32.totalorder %s9, 0
    %p64 = por %p62, %p63
    %p65 = scmp.ne.s32.totalorder %s57, %s59
    %p66 = scmp.eq.s32.totalorder %s14, 1
    %p67 = por %p65, %p66
    %p68 = scmp.ne.s32.totalorder %s59, %s60
    %p69 = scmp.eq.s32.totalorder %s14, 0
    %p70 = por %p68, %p69
    %p71 = scmp.ne.s32.totalorder %s59, %s60
    %p72 = scmp.eq.s32.totalorder %s15, 1
    %p73 = por %p71, %p72
    %p75 = scmp.ne.s32.totalorder %s60, %s74
    %p76 = scmp.eq.s32.totalorder %s15, 0
    %p77 = por %p75, %p76
    %s79 = sadd.s32 %s78, 1
    %p82 = scmp.eq.s32.totalorder %s9, 1
    %p83 = scmp.ne.s32.totalorder %s78, %s80
    %p84 = scmp.eq.s32.totalorder %s9, 0
    %p85 = por %p83, %p84
    %p86 = scmp.ne.s32.totalorder %s78, %s80
    %p87 = scmp.eq.s32.totalorder %s14, 1
    %p88 = por %p86, %p87
    %p89 = scmp.ne.s32.totalorder %s80, %s81
    %p90 = scmp.eq.s32.totalorder %s14, 0
    %p91 = por %p89, %p90
    %p92 = scmp.ne.s32.totalorder %s80, %s81
    %p93 = scmp.eq.s32.totalorder %s15, 1
    %p94 = por %p92, %p93
    %p96 = scmp.ne.s32.totalorder %s81, %s95
    %p97 = scmp.eq.s32.totalorder %s15, 0
    %p98 = por %p96, %p97
    %s99 = ssub.s32 %s16, %s28
    %s100 = ssub.s32 %s17, %s24
    %s101 = sor.u32 %s99, %s100
    %p102 = scmp.eq.s32.totalorder %s101, 0
    %s104 = sadd.s32 %s103, 1
    %s105 = scalar_select %p102, %s103, %s104
    %p108 = pneg %p102
    %p109 = scmp.eq.s32.totalorder %s9, 1
    %p110 = por %p108, %p109
    %p111 = scmp.ne.s32.totalorder %s103, %s106
    %p112 = scmp.eq.s32.totalorder %s9, 0
    %p113 = por %p111, %p112
    %p114 = scmp.ne.s32.totalorder %s103, %s106
    %p115 = scmp.eq.s32.totalorder %s14, 1
    %p116 = por %p114, %p115
    %p117 = scmp.ne.s32.totalorder %s106, %s107
    %p118 = scmp.eq.s32.totalorder %s14, 0
    %p119 = por %p117, %p118
    %p120 = scmp.ne.s32.totalorder %s106, %s107
    %p121 = scmp.eq.s32.totalorder %s15, 1
    %p122 = por %p120, %p121
    %p124 = scmp.ne.s32.totalorder %s107, %s123
    %p125 = scmp.eq.s32.totalorder %s15, 0
    %p126 = por %p124, %p125
    %p127 = scmp.le.s32.totalorder 1, %s9
    %p128 = scmp.lt.s32.totalorder %s9, 3
    %p129 = pnand %p127, %p128
    %p130 = pneg %p129
    // Predicated region
    $region9: #{stacked_conv_layers.6} parent=5 // pred_check
      _
    $region10: #{stacked_conv_layers.6} parent=5 // pred_check_branch
      %132 = sbr.rel (%p129) target = $region12
    $region11: #{stacked_conv_layers.6} parent=5 // pred_region
      %s133 = ssub.s32 %s9, 1
      // Predicated region
      $region13: #{stacked_conv_layers.6} parent=11 // pred_check
        %p134 = pneg %p70
      $region14: #{stacked_conv_layers.6} parent=11 // pred_check_branch
        %136 = sbr.rel (%p134) target = $region16
      $region15: #{stacked_conv_layers.6} parent=11 // pred_region
        _
      $region16: #{stacked_conv_layers.6} parent=11 // pred_fallthru
        _
      // Predicated region
      $region17: #{stacked_conv_layers.6} parent=11 // pred_check
        %p137 = pneg %p91
      $region18: #{stacked_conv_layers.6} parent=11 // pred_check_branch
        %139 = sbr.rel (%p137) target = $region20
      $region19: #{stacked_conv_layers.6} parent=11 // pred_region
        _
      $region20: #{stacked_conv_layers.6} parent=11 // pred_fallthru
        _
    $region12: #{stacked_conv_layers.6} parent=5 // pred_fallthru
      _
    %p140 = scmp.lt.s32.totalorder %s9, 2
    // Predicated region
    $region21: #{stacked_conv_layers.6} parent=5 // pred_check
      %p141 = pneg %p140
    $region22: #{stacked_conv_layers.6} parent=5 // pred_check_branch
      %143 = sbr.rel (%p141) target = $region24
    $region23: #{stacked_conv_layers.6} parent=5 // pred_region
      // Predicated region
      $region25: #{stacked_conv_layers.6} parent=23 // pred_check
        %p144 = pneg %p43
      $region26: #{stacked_conv_layers.6} parent=23 // pred_check_branch
        %146 = sbr.rel (%p144) target = $region28
      $region27: #{stacked_conv_layers.6} parent=23 // pred_region
        %p147 = scmp.lt.s32.totalorder %s16, 1
        %s148 = scalar_select %p147, %s16, 1
        %p149 = scmp.lt.s32.totalorder %s17, 0
        %s150 = scalar_select %p149, %s17, 0
        %s151 = smul.addr %s148, 27
        %s152 = sadd.s32 %s150, %s151
        %s153 = smul.addr %s152, 8
        %s154 = scalar_lea.vmem %s0, %s153
      $region28: #{stacked_conv_layers.6} parent=23 // pred_fallthru
        _
    $region24: #{stacked_conv_layers.6} parent=5 // pred_fallthru
      _
    %p155 = scmp.le.s32.totalorder 1, %s9
    %p156 = scmp.lt.s32.totalorder %s9, 3
    %p157 = pnand %p155, %p156
    %p158 = pneg %p157
    // Predicated region
    $region29: #{stacked_conv_layers.6} parent=5 // pred_check
      _
    $region30: #{stacked_conv_layers.6} parent=5 // pred_check_branch
      %160 = sbr.rel (%p157) target = $region32
    $region31: #{stacked_conv_layers.6} parent=5 // pred_region
      %s161 = ssub.s32 %s9, 1
      %p162 = scmp.lt.s32.totalorder %s18, 1
      %s163 = scalar_select %p162, %s18, 1
      %p164 = scmp.lt.s32.totalorder %s19, 0
      %s165 = scalar_select %p164, %s19, 0
      %s166 = smul.addr %s163, 27
      %s167 = sadd.s32 %s165, %s166
      %s168 = smul.addr %s167, 8
      %s169 = scalar_lea.vmem %s0, %s168
      %p170 = pneg %p49
      %p171 = pneg %p46
      %p172 = pneg %p70
      %p173 = pneg %p67
      %p174 = pneg %p91
      %p175 = pneg %p88
      %p176 = pneg %p119
      %p177 = pneg %p116
      %p178 = scmp.lt.s32.totalorder %s18, 1
      %s179 = scalar_select %p178, %s18, 1
      %p180 = scmp.lt.s32.totalorder %s19, 0
      %s181 = scalar_select %p180, %s19, 0
      %s182 = sadd.s32 %s181, %s179
      %s183 = smul.addr %s182, 8
      %s184 = scalar_lea.vmem %s3, %s183
      %p185 = scmp.lt.s32.totalorder %s18, 1
      %s186 = scalar_select %p185, %s18, 1
      %p187 = scmp.lt.s32.totalorder %s19, 0
      %s188 = scalar_select %p187, %s19, 0
      %s189 = smul.addr %s186, 27
      %s190 = sadd.s32 %s188, %s189
      %s191 = smul.addr %s190, 8
      %s192 = scalar_lea.vmem %s0, %s191
      %p193 = scmp.lt.s32.totalorder %s18, 1
      %s194 = scalar_select %p193, %s18, 1
      %p195 = scmp.lt.s32.totalorder %s19, 0
      %s196 = scalar_select %p195, %s19, 0
      %s197 = sadd.s32 %s196, %s194
      %s198 = smul.addr %s197, 8
      %s199 = scalar_lea.vmem %s3, %s198
      %v200 = vld [vmem:[%s1] sm:$0xff]
      %v201 = vld [vmem:[%s1 + $0x8] sm:$0xff]
      %v202 = vld [vmem:[%s192] sm:$0xff]
      %v203 = vld [vmem:[%s192 + $0x8] sm:$0xff]
      %v204 = vld [vmem:[%s192 + $0x10] sm:$0xff]
      %v205 = vld [vmem:[%s192 + $0x18] sm:$0xff]
      %v206 = vld [vmem:[%s192 + $0x20] sm:$0xff]
      %v207 = vld [vmem:[%s192 + $0x28] sm:$0xff]
      %v208 = vld [vmem:[%s192 + $0x30] sm:$0xff]
      %v209 = vld [vmem:[%s192 + $0x38] sm:$0xff]
      %v210 = vld [vmem:[%s192 + $0x40] sm:$0xff]
      %v211 = vld [vmem:[%s192 + $0x48] sm:$0xff]
      %v212 = vld [vmem:[%s192 + $0x50] sm:$0xff]
      %v213 = vld [vmem:[%s192 + $0x58] sm:$0xff]
      %v214 = vld [vmem:[%s192 + $0x60] sm:$0xff]
      %v215 = vld [vmem:[%s192 + $0x68] sm:$0xff]
      %v216 = vld [vmem:[%s192 + $0x70] sm:$0xff]
      %v217 = vld [vmem:[%s192 + $0x78] sm:$0xff]
      %v218 = vld [vmem:[%s192 + $0x80] sm:$0xff]
      %v219 = vld [vmem:[%s192 + $0x88] sm:$0xff]
      %v220 = vld [vmem:[%s192 + $0x90] sm:$0xff]
      %v221 = vld [vmem:[%s192 + $0x98] sm:$0xff]
      %v222 = vld [vmem:[%s192 + $0xa0] sm:$0xff]
      %v223 = vld [vmem:[%s192 + $0xa8] sm:$0xff]
      %v224 = vld [vmem:[%s192 + $0xb0] sm:$0xff]
      %v225 = vld [vmem:[%s192 + $0xb8] sm:$0xff]
      %v226 = vld [vmem:[%s192 + $0xc0] sm:$0xff]
      %v227 = vld [vmem:[%s192 + $0xc8] sm:$0xff]
      %v228 = vld [vmem:[%s192 + $0xd0] sm:$0xff]
      %v229 = vld [vmem:[%s2] sm:$0xff]
      %231 = vset.pattern.permute.xlu0 0
      %232 = vperm.xlu0 %231, %v229
      %v233 = vpop.permute.xlu0 %232
      %vm235 = vcmask 719872
      %v237 = vsel %vm235, %v201, 0
      %239 = vmatprep.subr.mxu0 0.0
      %240 = vmatpush1.msra.mxu0 %v217
      %241 = vmatprep.subr.mxu0 0.0
      %242 = vmatpush1.msra.mxu0 %v216
      %243 = vmatprep.subr.mxu0 0.0
      %244 = vmatpush1.msra.mxu0 %v215
      %245 = vmatprep.subr.mxu0 0.0
      %246 = vmatpush1.msra.mxu0 %v214
      %247 = vmatprep.subr.mxu0 0.0
      %248 = vmatpush1.msra.mxu0 %v213
      %249 = vmatprep.subr.mxu0 0.0
      %250 = vmatpush1.msra.mxu0 %v212
      %251 = vmatprep.subr.mxu0 0.0
      %252 = vmatpush1.msra.mxu0 %v211
      %253 = vmatprep.subr.mxu0 0.0
      %254 = vmatpush1.msra.mxu0 %v210
      %255 = vmatprep.subr.mxu0 0.0
      %256 = vmatpush1.msra.mxu0 %v209
      %257 = vmatprep.subr.mxu0 0.0
      %258 = vmatpush1.msra.mxu0 %v208
      %259 = vmatprep.subr.mxu0 0.0
      %260 = vmatpush1.msra.mxu0 %v207
      %261 = vmatprep.subr.mxu0 0.0
      %262 = vmatpush1.msra.mxu0 %v206
      %263 = vmatprep.subr.mxu0 0.0
      %264 = vmatpush1.msra.mxu0 %v205
      %265 = vmatprep.subr.mxu0 0.0
      %266 = vmatpush1.msra.mxu0 %v204
      %267 = vmatprep.subr.mxu0 0.0
      %268 = vmatpush1.msra.mxu0 %v203
      %269 = vmatprep.subr.mxu0 0.0
      %270 = vmatpush1.msra.mxu0 %v202
      %271 = vmatprep.subr.mxu0 0.0
      %272 = vmatpush2.msra.mxu0 0.0
      %273 = vmatprep.subr.mxu0 0.0
      %274 = vmatpush2.msra.mxu0 0.0
      %275 = vmatprep.subr.mxu0 0.0
      %276 = vmatpush2.msra.mxu0 0.0
      %277 = vmatprep.subr.mxu0 0.0
      %278 = vmatpush2.msra.mxu0 0.0
      %279 = vmatprep.subr.mxu0 0.0
      %280 = vmatpush2.msra.mxu0 0.0
      %281 = vmatprep.subr.mxu0 0.0
      %282 = vmatpush2.msra.mxu0 %v228
      %283 = vmatprep.subr.mxu0 0.0
      %284 = vmatpush2.msra.mxu0 %v227
      %285 = vmatprep.subr.mxu0 0.0
      %286 = vmatpush2.msra.mxu0 %v226
      %287 = vmatprep.subr.mxu0 0.0
      %288 = vmatpush2.msra.mxu0 %v225
      %289 = vmatprep.subr.mxu0 0.0
      %290 = vmatpush2.msra.mxu0 %v224
      %291 = vmatprep.subr.mxu0 0.0
      %292 = vmatpush2.msra.mxu0 %v223
      %293 = vmatprep.subr.mxu0 0.0
      %294 = vmatpush2.msra.mxu0 %v222
      %295 = vmatprep.subr.mxu0 0.0
      %296 = vmatpush2.msra.mxu0 %v221
      %297 = vmatprep.subr.mxu0 0.0
      %298 = vmatpush2.msra.mxu0 %v220
      %299 = vmatprep.subr.mxu0 0.0
      %300 = vmatpush2.msra.mxu0 %v219
      %301 = vmatprep.subr.mxu0 0.0
      %302 = vmatpush2.msra.mxu0 %v218
      %303 = vmatprep.mubr.f32.mxu0 %v237
      %304 = vmatmul.mubr.f32.gmra.mxu0 %v200
      %v305 = vpop.f32.mrf.mxu0
      %v306 = vadd.f32 %v233, %v305
      %v307 = vpop.f32.mrf.mxu0
      %308 = vdwg.mxu0
      %309 = vst [vmem:[%s199] sm:$0xff] %v306
      %p310 = scmp.lt.s32.totalorder %s18, 1
      %s311 = scalar_select %p310, %s18, 1
      %p312 = scmp.lt.s32.totalorder %s19, 0
      %s313 = scalar_select %p312, %s19, 0
      %s314 = sadd.s32 %s313, %s311
      %s315 = smul.addr %s314, 8
      %s316 = scalar_lea.vmem %s3, %s315
      // Predicated region
      $region33: #{stacked_conv_layers.6} parent=31 // pred_check
        %p317 = pneg %p116
      $region34: #{stacked_conv_layers.6} parent=31 // pred_check_branch
        %319 = sbr.rel (%p317) target = $region36
      $region35: #{stacked_conv_layers.6} parent=31 // pred_region
        _
      $region36: #{stacked_conv_layers.6} parent=31 // pred_fallthru
        _
    $region32: #{stacked_conv_layers.6} parent=5 // pred_fallthru
      _
    %p320 = scmp.le.s32.totalorder 2, %s9
    // Predicated region
    $region37: #{stacked_conv_layers.6} parent=5 // pred_check
      %p321 = pneg %p320
    $region38: #{stacked_conv_layers.6} parent=5 // pred_check_branch
      %323 = sbr.rel (%p321) target = $region40
    $region39: #{stacked_conv_layers.6} parent=5 // pred_region
      %s324 = ssub.s32 %s9, 2
      // Predicated region
      $region41: #{stacked_conv_layers.6} parent=39 // pred_check
        %p325 = pneg %p122
      $region42: #{stacked_conv_layers.6} parent=39 // pred_check_branch
        %327 = sbr.rel (%p325) target = $region44
      $region43: #{stacked_conv_layers.6} parent=39 // pred_region
        %p328 = scmp.lt.s32.totalorder %s20, 1
        %s329 = scalar_select %p328, %s20, 1
        %p330 = scmp.lt.s32.totalorder %s21, 0
        %s331 = scalar_select %p330, %s21, 0
        %s332 = sadd.s32 %s331, %s329
        %s333 = smul.addr %s332, 8
        %s334 = scalar_lea.vmem %s3, %s333
      $region44: #{stacked_conv_layers.6} parent=39 // pred_fallthru
        _
    $region40: #{stacked_conv_layers.6} parent=5 // pred_fallthru
      _
  $region6: #{stacked_conv_layers.6} parent=0 // loop_footer
    %s13 = sadd.s32 1, %s9
  $region7: #{stacked_conv_layers.6} parent=0 // loop_footer_branch
    %8 = sbr.rel target = $region3
  $region8: #{stacked_conv_layers.6} parent=0 // loop_exit
    _

</llo_original>
